<compile_context>
chip_gen: v5e
topology: v5e:2x2
jax: 0.10.0
libtpu: 0.0.40
codegen_flags: <defaults>
</compile_context>

<pallas_src>
import jax
import jax.numpy as jnp
from jax.experimental import pallas as pl
from jax.experimental.pallas import tpu as pltpu

_LANES = 128


def _round_up(v, m):
    return ((v + m - 1) // m) * m


def _sublane_rows(dtype):
    # Full sublane tile: 8 rows of 32-bit; sub-32-bit dtypes pack 2x/4x rows.
    return 8 * max(1, 4 // jnp.dtype(dtype).itemsize)


# --------------------------------------------------------------------------
# Kernel
# --------------------------------------------------------------------------
def _gru_cell_kernel(x_ref, h_ref, w_ref, urz_ref, un_ref, b_ref, out_ref):
    """One grid step: full GRU gate math for a block of G map units.

    Block shapes (Bp = sublane-padded batch, Hp = lane-padded hidden):
      x_ref   : (G, Bp, I)
      h_ref   : (G, Bp, Hp)
      w_ref   : (G, I, 3*Hp)   fused [W_r^T | W_z^T | W_n^T], gate-lane-padded
      urz_ref : (G, Hp, 2*Hp)  fused [U_r^T | U_z^T]
      un_ref  : (G, Hp, Hp)    U_n^T
      b_ref   : (G, 1, 3*Hp)   fused [b_r | b_z | b_n] (kept in f32)
      out_ref : (G, Bp, Hp)
    """
    f32 = jnp.float32
    hp = out_ref.shape[-1]

    x = x_ref[...]
    h = h_ref[...]
    hf = h.astype(f32)

    # Fused input-side contraction for all three gates; bf16 weights are
    # upcast on-chip, accumulation stays in f32 (v5e has no bf16 VPU/EUP).
    gx = jnp.einsum('gbi,gik->gbk', x, w_ref[...],
                    preferred_element_type=f32) + b_ref[...].astype(f32)
    # Fused recurrent contraction for r and z.
    gh = jnp.einsum('gbh,ghk->gbk', h, urz_ref[...],
                    preferred_element_type=f32)

    # All slice starts are multiples of 128 lanes (Hp padding), so these are
    # whole-vreg lane selects rather than XLU shuffles / masked partial ops.
    r = jax.nn.sigmoid(gx[..., :hp] + gh[..., :hp])
    z = jax.nn.sigmoid(gx[..., hp:2 * hp] + gh[..., hp:])
    # gh is dead past this point (keeps vreg pressure down at large G).

    # Reset gate applied BEFORE the U_n matmul (module semantics).
    rh = (r * hf).astype(h.dtype)
    n = jnp.tanh(gx[..., 2 * hp:]
                 + jnp.einsum('gbh,ghk->gbk', rh, un_ref[...],
                              preferred_element_type=f32))

    h_new = (1.0 - z) * n + z * hf
    out_ref[...] = h_new.astype(out_ref.dtype)


# --------------------------------------------------------------------------
# Block-size / VMEM-budget heuristics
# --------------------------------------------------------------------------
def _tpu_vmem_budget():
    """(vmem_limit_bytes, num_tensorcores) for the local TPU generation."""
    kind = ''
    try:
        kind = jax.devices()[0].device_kind.lower()
    except Exception:
        pass
    if 'v7' in kind:
        return 48 * 1024 * 1024, 2           # 64 MiB physical VMEM, 2 TCs/chip
    if 'v2' in kind or 'v3' in kind:
        return 12 * 1024 * 1024, 1           # small VMEM on older generations
    return 96 * 1024 * 1024, 1               # v4 / v5e / v6e: 128 MiB physical


def _block_bytes(g, bp, i, hp, act_bytes, w_bytes):
    """Approximate VMEM footprint of one grid step with block size g."""
    w_elems = g * (i * 3 * hp + hp * 2 * hp + hp * hp)
    b_elems = g * 3 * hp
    act_in = g * bp * (i + hp)
    act_out = g * bp * hp
    # Double-buffered pipeline copies of every input/output block.
    pipelined = 2 * (w_elems * w_bytes + b_elems * 4
                     + (act_in + act_out) * act_bytes)
    # In-kernel f32 intermediates: upcast weight copies (if sub-f32 weights),
    # upcast activations, gx (3Hp) + gh (2Hp) + ~5 gate-sized tiles.
    interm = ((w_elems * 4 if w_bytes < 4 else 0)
              + (act_in * 4 if act_bytes < 4 else 0)
              + g * bp * (3 * hp + 2 * hp + 5 * hp) * 4)
    return pipelined + interm


def _pick_block_units(map_units, bp, i, hp, act_bytes, w_bytes,
                      budget_bytes, num_cores, block_units=None):
    """Largest divisor G of map_units whose blocks fit the VMEM budget,
    preferring >= 2 grid steps per TensorCore so all cores stay busy."""
    if block_units is not None:
        assert map_units % block_units == 0, 'block_units must divide map_units'
        return block_units
    divisors = [g for g in range(1, map_units + 1) if map_units % g == 0]
    fitting = [g for g in divisors
               if _block_bytes(g, bp, i, hp, act_bytes, w_bytes) <= budget_bytes]
    if not fitting:
        fitting = [1]
    preferred = [g for g in fitting if map_units // g >= 2 * num_cores]
    return max(preferred) if preferred else max(fitting)


# --------------------------------------------------------------------------
# Parameter packing (one-time, hoisted out of the forward pass)
# --------------------------------------------------------------------------
def pack_gru_params(params, weights_dtype=jnp.bfloat16):
    """Transpose + gate-fuse + lane-pad + (by default) bf16-cast the weights.

    bf16 weight storage halves the dominant HBM traffic of this memory-bound
    op; the kernel accumulates in f32, so only ~2^-8 relative weight rounding
    is lost.  Pass weights_dtype=jnp.float32 (or None) for bit-exact weights.
    Lane padding (H -> Hp = round_up(H, 128)) keeps every gate slice on a
    vreg lane boundary and makes the output store unmasked; padded rows /
    columns are zeros, so the math is unchanged.
    """
    H = params['b_r'].shape[-1]
    Hp = _round_up(H, _LANES)
    ph = Hp - H

    def w_t(w):                                  # (M, H, I) -> (M, I, Hp)
        w = jnp.transpose(w, (0, 2, 1))
        return jnp.pad(w, ((0, 0), (0, 0), (0, ph))) if ph else w

    def u_t(u):                                  # (M, H, H) -> (M, Hp, Hp)
        u = jnp.transpose(u, (0, 2, 1))
        return jnp.pad(u, ((0, 0), (0, ph), (0, ph))) if ph else u

    def b_p(b):                                  # (M, H) -> (M, Hp)
        return jnp.pad(b, ((0, 0), (0, ph))) if ph else b

    w_f = jnp.concatenate([w_t(params['w_r']), w_t(params['w_z']),
                           w_t(params['w_n'])], axis=-1)              # (M, I, 3Hp)
    u_rz = jnp.concatenate([u_t(params['u_r']), u_t(params['u_z'])],
                           axis=-1)                                    # (M, Hp, 2Hp)
    u_n = u_t(params['u_n'])                                           # (M, Hp, Hp)
    b_f = jnp.concatenate([b_p(params['b_r']), b_p(params['b_z']),
                           b_p(params['b_n'])],
                          axis=-1)[:, None, :].astype(jnp.float32)     # (M, 1, 3Hp)
    if weights_dtype is not None:
        w_f, u_rz, u_n = (a.astype(weights_dtype) for a in (w_f, u_rz, u_n))
    return {'w': w_f, 'urz': u_rz, 'un': u_n, 'b': b_f,
            'hidden_size': H, 'hidden_padded': Hp}


# --------------------------------------------------------------------------
# Forward passes
# --------------------------------------------------------------------------
def gru_cell_step_canonical(x_mu, h_mu, packed, block_units=None):
    """Core step in the kernel's canonical layout (zero per-step layout glue).

    x_mu : (map_units, batch_padded, input_size)
    h_mu : (map_units, batch_padded, hidden_padded)   # padded lanes are zero
    Returns the new hidden state in the same (M, Bp, Hp) layout so a recurrent
    loop can feed it straight back without transposes or re-padding.
    """
    M, Bp, I = x_mu.shape
    Hp = packed['hidden_padded']
    assert h_mu.shape == (M, Bp, Hp)
    dtype = x_mu.dtype

    budget, cores = _tpu_vmem_budget()
    act_bytes = jnp.dtype(dtype).itemsize
    w_bytes = jnp.dtype(packed['w'].dtype).itemsize
    G = _pick_block_units(M, Bp, I, Hp, act_bytes, w_bytes, budget, cores,
                          block_units)

    spec = lambda d1, d2: pl.BlockSpec((G, d1, d2), lambda m: (m, 0, 0))

    return pl.pallas_call(
        _gru_cell_kernel,
        grid=(M // G,),
        in_specs=[
            spec(Bp, I),         # x
            spec(Bp, Hp),        # h
            spec(I, 3 * Hp),     # fused [W_r | W_z | W_n]^T
            spec(Hp, 2 * Hp),    # fused [U_r | U_z]^T
            spec(Hp, Hp),        # U_n^T
            spec(1, 3 * Hp),     # fused bias
        ],
        out_specs=spec(Bp, Hp),
        out_shape=jax.ShapeDtypeStruct((M, Bp, Hp), dtype),
        compiler_params=pltpu.CompilerParams(
            dimension_semantics=("parallel",),
            vmem_limit_bytes=budget),
    )(x_mu, h_mu, packed['w'], packed['urz'], packed['un'], packed['b'])


def gru_cell_forward(x, packed, state=None, block_units=None):
    """Spec-compatible forward.

    Args:
      x: (batch, map_units, input_size) or (map_units, input_size)
      packed: output of pack_gru_params (pre-fused / pre-transposed weights).
      state: optional (h,) with h of shape (batch, map_units, hidden) or
             (map_units, hidden).
    Returns:
      (h_t,) matching the input batching convention.
    """
    is_batched = x.ndim == 3
    if not is_batched:
        x = x[None]
    B, M, I = x.shape
    H, Hp = packed['hidden_size'], packed['hidden_padded']
    dtype = x.dtype

    if state is None:
        h = jnp.zeros((B, M, H), dtype=dtype)
    else:
        h = state[0] if is_batched else state[0][None]

    # Sublane-pad the batch (8 rows f32 / 16 rows bf16) and lane-pad the
    # hidden state; padded entries are zeros, so results are unchanged and
    # every activation tile / MXU pass / output store is full-width.
    Bp = _round_up(max(B, 1), _sublane_rows(dtype))
    pad_b, pad_h = Bp - B, Hp - H
    if pad_b:
        x = jnp.pad(x, ((0, pad_b), (0, 0), (0, 0)))
    if pad_b or pad_h:
        h = jnp.pad(h, ((0, pad_b), (0, 0), (0, pad_h)))

    # Layout glue for the (batch, map_units, .) spec interface only.  In a
    # recurrent loop use gru_cell_step_canonical with the (M, Bp, .) layout so
    # these transposes (an extra HBM round trip of the small activations) are
    # not paid every timestep.
    x_mu = jnp.transpose(x, (1, 0, 2))   # (M, Bp, I)
    h_mu = jnp.transpose(h, (1, 0, 2))   # (M, Bp, Hp)

    out_mu = gru_cell_step_canonical(x_mu, h_mu, packed, block_units)

    h_t = jnp.transpose(out_mu, (1, 0, 2))[:B, :, :H]
    return (h_t,) if is_batched else (h_t[0],)


# --------------------------------------------------------------------------
# Init / reference / test
# --------------------------------------------------------------------------
def init_gru_params(key, map_units, input_size, hidden_size,
                    dtype=jnp.float32):
    """Deterministic parameter init (uniform(-1/sqrt(H), 1/sqrt(H)))."""
    stdv = 1.0 / float(hidden_size) ** 0.5
    params = {}
    keys = jax.random.split(key, 9)
    names = ['w_r', 'u_r', 'b_r', 'w_z', 'u_z', 'b_z', 'w_n', 'u_n', 'b_n']
    shapes = [
        (map_units, hidden_size, input_size),
        (map_units, hidden_size, hidden_size),
        (map_units, hidden_size),
    ] * 3
    for k, name, shape in zip(keys, names, shapes):
        params[name] = jax.random.uniform(
            k, shape, dtype=dtype, minval=-stdv, maxval=stdv)
    return params


def _with_rounded_weights(params, dtype):
    """Reference helper: round the weight matrices through `dtype` (bias kept)."""
    out = dict(params)
    for k in ('w_r', 'u_r', 'w_z', 'u_z', 'w_n', 'u_n'):
        out[k] = params[k].astype(dtype).astype(params[k].dtype)
    return out


def _reference_forward(x, params, state=None):
    """Pure-JAX reference matching the PyTorch module's semantics."""
    is_batched = x.ndim == 3
    if not is_batched:
        x = x[None]
    B, M, I = x.shape
    H = params['b_r'].shape[-1]
    h = jnp.zeros((B, M, H), x.dtype) if state is None else (
        state[0] if is_batched else state[0][None])
    mm = lambda w, v: jnp.einsum('mhi,bmi->bmh', w, v)
    r = jax.nn.sigmoid(mm(params['w_r'], x) + mm(params['u_r'], h)
                       + params['b_r'][None])
    z = jax.nn.sigmoid(mm(params['w_z'], x) + mm(params['u_z'], h)
                       + params['b_z'][None])
    n = jnp.tanh(mm(params['w_n'], x) + mm(params['u_n'], r * h)
                 + params['b_n'][None])
    h_t = (1 - z) * n + z * h
    return (h_t,) if is_batched else (h_t[0],)


if __name__ == "__main__":
    batch, map_units, input_size, hidden_size = 2, 4, 16, 32
    key = jax.random.PRNGKey(0)
    k_p, k_x, k_h = jax.random.split(key, 3)

    params = init_gru_params(k_p, map_units, input_size, hidden_size)
    x = jax.random.normal(k_x, (batch, map_units, input_size), jnp.float32)
    h0 = jax.random.normal(k_h, (batch, map_units, hidden_size), jnp.float32)

    # --- exact-precision path (f32 weights): tight check vs the reference ---
    packed_f32 = pack_gru_params(params, weights_dtype=jnp.float32)
    (h_t,) = gru_cell_forward(x, packed_f32, state=(h0,))
    h_t = jax.block_until_ready(h_t)
    (h_ref,) = _reference_forward(x, params, state=(h0,))
    assert h_t.shape == (batch, map_units, hidden_size)
    assert jnp.allclose(h_t, h_ref, atol=1e-5, rtol=1e-5)

    # --- default path (bf16 weight storage, f32 accumulation) ---
    packed = pack_gru_params(params)   # bf16 weights by default
    (h_bf,) = gru_cell_forward(x, packed, state=(h0,))
    h_bf = jax.block_until_ready(h_bf)
    (h_ref_bf,) = _reference_forward(
        x, _with_rounded_weights(params, jnp.bfloat16), state=(h0,))
    assert jnp.allclose(h_bf, h_ref_bf, atol=5e-3, rtol=5e-3)

    # --- default-zero-state and unbatched paths ---
    (h_nb,) = gru_cell_forward(x[0], packed_f32)
    h_nb = jax.block_until_ready(h_nb)
    assert h_nb.shape == (map_units, hidden_size)
    (h_nb_ref,) = _reference_forward(x[0], params)
    assert jnp.allclose(h_nb, h_nb_ref, atol=1e-5, rtol=1e-5)

    print("KERNEL_OK")
</pallas_src>

<mosaic_0001>
module attributes {stable_mosaic.version = 11 : i64} {
  func.func @_gru_cell_kernel(%arg0: i32, %arg1: memref<2x8x16xf32, #tpu.memory_space<vmem>>, %arg2: memref<2x8x128xf32, #tpu.memory_space<vmem>>, %arg3: memref<2x16x384xf32, #tpu.memory_space<vmem>>, %arg4: memref<2x128x256xf32, #tpu.memory_space<vmem>>, %arg5: memref<2x128x128xf32, #tpu.memory_space<vmem>>, %arg6: memref<2x1x384xf32, #tpu.memory_space<vmem>>, %arg7: memref<2x8x128xf32, #tpu.memory_space<vmem>>) attributes {dimension_semantics = [#tpu.dimension_semantics<parallel>], iteration_bounds = array<i64: 2>, scalar_prefetch = 0 : i64, scratch_operands = 0 : i64, tpu.core_type = #tpu.core_type<tc>, window_params = [{transform_indices = @transform_0, window_bounds = array<i64: 2, 8, 16>}, {transform_indices = @transform_1, window_bounds = array<i64: 2, 8, 128>}, {transform_indices = @transform_2, window_bounds = array<i64: 2, 16, 384>}, {transform_indices = @transform_3, window_bounds = array<i64: 2, 128, 256>}, {transform_indices = @transform_4, window_bounds = array<i64: 2, 128, 128>}, {transform_indices = @transform_5, window_bounds = array<i64: 2, 1, 384>}, {transform_indices = @transform_6, window_bounds = array<i64: 2, 8, 128>}]} {
    %c0 = arith.constant 0 : index
    %c0_0 = arith.constant 0 : index
    %c0_1 = arith.constant 0 : index
    %0 = vector.load %arg1[%c0, %c0_0, %c0_1] : memref<2x8x16xf32, #tpu.memory_space<vmem>>, vector<2x8x16xf32>
    %c0_2 = arith.constant 0 : index
    %c0_3 = arith.constant 0 : index
    %c0_4 = arith.constant 0 : index
    %1 = vector.load %arg2[%c0_2, %c0_3, %c0_4] : memref<2x8x128xf32, #tpu.memory_space<vmem>>, vector<2x8x128xf32>
    %c0_5 = arith.constant 0 : index
    %c0_6 = arith.constant 0 : index
    %c0_7 = arith.constant 0 : index
    %2 = vector.load %arg3[%c0_5, %c0_6, %c0_7] : memref<2x16x384xf32, #tpu.memory_space<vmem>>, vector<2x16x384xf32>
    "tpu.trace_start"() <{level = 10 : i32, message = "gbi,gik->gbk"}> : () -> ()
    %cst = arith.constant dense<0.000000e+00> : vector<2x8x384xf32>
    %3 = tpu.matmul %0, %2, %cst {dimension_numbers = #tpu.dot_dimension_numbers<[2], [1], [1], [2], [0, 0, 0, 1, 1, 2], [0], [0]>} : vector<2x8x16xf32>, vector<2x16x384xf32>, vector<2x8x384xf32> -> vector<2x8x384xf32>
    "tpu.trace_stop"() : () -> ()
    %c0_8 = arith.constant 0 : index
    %c0_9 = arith.constant 0 : index
    %c0_10 = arith.constant 0 : index
    %4 = vector.load %arg6[%c0_8, %c0_9, %c0_10] : memref<2x1x384xf32, #tpu.memory_space<vmem>>, vector<2x1x384xf32>
    %5 = vector.broadcast %4 : vector<2x1x384xf32> to vector<2x8x384xf32>
    %6 = arith.addf %3, %5 : vector<2x8x384xf32>
    %c0_11 = arith.constant 0 : index
    %c0_12 = arith.constant 0 : index
    %c0_13 = arith.constant 0 : index
    %7 = vector.load %arg4[%c0_11, %c0_12, %c0_13] : memref<2x128x256xf32, #tpu.memory_space<vmem>>, vector<2x128x256xf32>
    "tpu.trace_start"() <{level = 10 : i32, message = "gbh,ghk->gbk"}> : () -> ()
    %cst_14 = arith.constant dense<0.000000e+00> : vector<2x8x256xf32>
    %8 = tpu.matmul %1, %7, %cst_14 {dimension_numbers = #tpu.dot_dimension_numbers<[2], [1], [1], [2], [0, 0, 0, 1, 1, 2], [0], [0]>} : vector<2x8x128xf32>, vector<2x128x256xf32>, vector<2x8x256xf32> -> vector<2x8x256xf32>
    "tpu.trace_stop"() : () -> ()
    %9 = vector.extract_strided_slice %6 {offsets = [0, 0, 0], sizes = [2, 8, 128], strides = [1, 1, 1]} : vector<2x8x384xf32> to vector<2x8x128xf32>
    %10 = vector.extract_strided_slice %8 {offsets = [0, 0, 0], sizes = [2, 8, 128], strides = [1, 1, 1]} : vector<2x8x256xf32> to vector<2x8x128xf32>
    %11 = arith.addf %9, %10 : vector<2x8x128xf32>
    %12 = arith.negf %11 : vector<2x8x128xf32>
    %13 = math.exp %12 : vector<2x8x128xf32>
    %cst_15 = arith.constant 1.000000e+00 : f32
    %14 = vector.broadcast %cst_15 : f32 to vector<2x8x128xf32>
    %15 = arith.addf %14, %13 : vector<2x8x128xf32>
    %16 = arith.divf %14, %15 : vector<2x8x128xf32>
    %17 = vector.extract_strided_slice %6 {offsets = [0, 0, 128], sizes = [2, 8, 128], strides = [1, 1, 1]} : vector<2x8x384xf32> to vector<2x8x128xf32>
    %18 = vector.extract_strided_slice %8 {offsets = [0, 0, 128], sizes = [2, 8, 128], strides = [1, 1, 1]} : vector<2x8x256xf32> to vector<2x8x128xf32>
    %19 = arith.addf %17, %18 : vector<2x8x128xf32>
    %20 = arith.negf %19 : vector<2x8x128xf32>
    %21 = math.exp %20 : vector<2x8x128xf32>
    %cst_16 = arith.constant 1.000000e+00 : f32
    %22 = vector.broadcast %cst_16 : f32 to vector<2x8x128xf32>
    %23 = arith.addf %22, %21 : vector<2x8x128xf32>
    %24 = arith.divf %22, %23 : vector<2x8x128xf32>
    %25 = arith.mulf %16, %1 : vector<2x8x128xf32>
    %26 = vector.extract_strided_slice %6 {offsets = [0, 0, 256], sizes = [2, 8, 128], strides = [1, 1, 1]} : vector<2x8x384xf32> to vector<2x8x128xf32>
    %c0_17 = arith.constant 0 : index
    %c0_18 = arith.constant 0 : index
    %c0_19 = arith.constant 0 : index
    %27 = vector.load %arg5[%c0_17, %c0_18, %c0_19] : memref<2x128x128xf32, #tpu.memory_space<vmem>>, vector<2x128x128xf32>
    "tpu.trace_start"() <{level = 10 : i32, message = "gbh,ghk->gbk"}> : () -> ()
    %cst_20 = arith.constant dense<0.000000e+00> : vector<2x8x128xf32>
    %28 = tpu.matmul %25, %27, %cst_20 {dimension_numbers = #tpu.dot_dimension_numbers<[2], [1], [1], [2], [0, 0, 0, 1, 1, 2], [0], [0]>} : vector<2x8x128xf32>, vector<2x128x128xf32>, vector<2x8x128xf32> -> vector<2x8x128xf32>
    "tpu.trace_stop"() : () -> ()
    %29 = arith.addf %26, %28 : vector<2x8x128xf32>
    %30 = math.tanh %29 : vector<2x8x128xf32>
    %cst_21 = arith.constant 1.000000e+00 : f32
    %31 = vector.broadcast %cst_21 : f32 to vector<2x8x128xf32>
    %32 = arith.subf %31, %24 : vector<2x8x128xf32>
    %33 = arith.mulf %32, %30 : vector<2x8x128xf32>
    %34 = arith.mulf %24, %1 : vector<2x8x128xf32>
    %35 = arith.addf %33, %34 : vector<2x8x128xf32>
    %c0_22 = arith.constant 0 : index
    %c0_23 = arith.constant 0 : index
    %c0_24 = arith.constant 0 : index
    %36 = vector.load %arg7[%c0_22, %c0_23, %c0_24] : memref<2x8x128xf32, #tpu.memory_space<vmem>>, vector<2x8x128xf32>
    tpu.vector_store %arg7[%c0_22, %c0_23, %c0_24], %35 {strides = array<i32>} : memref<2x8x128xf32, #tpu.memory_space<vmem>>, vector<2x8x128xf32>,
    return
  }
  func.func @transform_0(%arg0: i32) -> (i32, i32, i32) {
    %c0_i32 = arith.constant 0 : i32
    %c0_i32_0 = arith.constant 0 : i32
    %c0_i32_1 = arith.constant 0 : i32
    return %arg0, %c0_i32, %c0_i32_0 : i32, i32, i32
  }
  func.func @transform_1(%arg0: i32) -> (i32, i32, i32) {
    %c0_i32 = arith.constant 0 : i32
    %c0_i32_0 = arith.constant 0 : i32
    %c0_i32_1 = arith.constant 0 : i32
    return %arg0, %c0_i32, %c0_i32_0 : i32, i32, i32
  }
  func.func @transform_2(%arg0: i32) -> (i32, i32, i32) {
    %c0_i32 = arith.constant 0 : i32
    %c0_i32_0 = arith.constant 0 : i32
    %c0_i32_1 = arith.constant 0 : i32
    return %arg0, %c0_i32, %c0_i32_0 : i32, i32, i32
  }
  func.func @transform_3(%arg0: i32) -> (i32, i32, i32) {
    %c0_i32 = arith.constant 0 : i32
    %c0_i32_0 = arith.constant 0 : i32
    %c0_i32_1 = arith.constant 0 : i32
    return %arg0, %c0_i32, %c0_i32_0 : i32, i32, i32
  }
  func.func @transform_4(%arg0: i32) -> (i32, i32, i32) {
    %c0_i32 = arith.constant 0 : i32
    %c0_i32_0 = arith.constant 0 : i32
    %c0_i32_1 = arith.constant 0 : i32
    return %arg0, %c0_i32, %c0_i32_0 : i32, i32, i32
  }
  func.func @transform_5(%arg0: i32) -> (i32, i32, i32) {
    %c0_i32 = arith.constant 0 : i32
    %c0_i32_0 = arith.constant 0 : i32
    %c0_i32_1 = arith.constant 0 : i32
    return %arg0, %c0_i32, %c0_i32_0 : i32, i32, i32
  }
  func.func @transform_6(%arg0: i32) -> (i32, i32, i32) {
    %c0_i32 = arith.constant 0 : i32
    %c0_i32_0 = arith.constant 0 : i32
    %c0_i32_1 = arith.constant 0 : i32
    return %arg0, %c0_i32, %c0_i32_0 : i32, i32, i32
  }
}

</mosaic_0001>

<llo_original>
// kernel: tpu_custom_call.1
$region0: #{tpu_custom_call.1}
  #allocation0 [shape = 'u32[]', space=smem, size = 0x4, offset = 0x4, fixed_abs, tag = 'smem constant byte address 0x4 - core index']
  #allocation1 [shape = 'u32[72,128]{1,0:T(1,128)}', space=vmem, size = 0x9000, scoped, tag = 'internal scratch']
  %s0 = inlined_call_operand.hbm [shape: f32[4,8,16], index: 0, kind: input, shape index: {}]
  %s1 = inlined_call_operand.hbm [shape: f32[4,8,128], index: 1, kind: input, shape index: {}]
  %s2 = inlined_call_operand.hbm [shape: f32[4,16,384], index: 2, kind: input, shape index: {}]
  %s3 = inlined_call_operand.hbm [shape: f32[4,128,256], index: 3, kind: input, shape index: {}]
  %s4 = inlined_call_operand.hbm [shape: f32[4,128,128], index: 4, kind: input, shape index: {}]
  %s5 = inlined_call_operand.hbm [shape: f32[4,1,384], index: 5, kind: input, shape index: {}]
  %s6 = inlined_call_operand.hbm [shape: f32[4,8,128], index: 6, kind: output, shape index: {}]
  %s7 = sld [smem:[#allocation0]]
  $region81: #{tpu_custom_call.1} parent=0
    _
  %s9 = ssub.s32 1, %s7
  %s10 = scalar_select 0, %s9, %s7
  $region1: #{tpu_custom_call.1} parent=0
    #allocation2 [shape = 'u8[16384]{0}', space=vmem, size = 0x4000, scoped, tag = 'input window, operand 0']
    #allocation3 [shape = 's32[2]{0}', space=sflag, size = 0x8, scoped, tag = 'scoped memory for tpu_custom_call.1']
    #allocation4 [shape = 's32[2]{0}', space=sflag, size = 0x8, scoped, tag = 'scoped memory for tpu_custom_call.1']
    #allocation5 [shape = 'u8[16384]{0}', space=vmem, size = 0x4000, scoped, tag = 'input window, operand 1']
    #allocation6 [shape = 's32[2]{0}', space=sflag, size = 0x8, scoped, tag = 'scoped memory for tpu_custom_call.1']
    #allocation7 [shape = 'u8[98304]{0}', space=vmem, size = 0x18000, scoped, tag = 'input window, operand 2']
    #allocation8 [shape = 'u8[524288]{0}', space=vmem, size = 0x80000, scoped, tag = 'input window, operand 3']
    #allocation9 [shape = 's32[2]{0}', space=sflag, size = 0x8, scoped, tag = 'scoped memory for tpu_custom_call.1']
    #allocation10 [shape = 'u8[262144]{0}', space=vmem, size = 0x40000, scoped, tag = 'input window, operand 4']
    #allocation11 [shape = 'u8[6144]{0}', space=vmem, size = 0x1800, scoped, tag = 'input window, operand 5']
    #allocation12 [shape = 's32[2]{0}', space=sflag, size = 0x8, scoped, tag = 'scoped memory for tpu_custom_call.1']
    #allocation13 [shape = 'u8[16384]{0}', space=vmem, size = 0x4000, scoped, tag = 'output window, operand 0']
    %11 = vsyncpa [#allocation3], 0
    %s12 = scalar_lea.sflag [#allocation3], 1
    %13 = vsyncpa %s12, 0
    %14 = vsyncpa [#allocation6], 0
    %s15 = scalar_lea.sflag [#allocation6], 1
    %16 = vsyncpa %s15, 0
    %17 = vsyncpa [#allocation9], 0
    %s18 = scalar_lea.sflag [#allocation9], 1
    %19 = vsyncpa %s18, 0
    %20 = vsyncpa [#allocation12], 0
    %s21 = scalar_lea.sflag [#allocation12], 1
    %22 = vsyncpa %s21, 0
    %23 = vsyncpa [#allocation4], 0
    %s24 = scalar_lea.sflag [#allocation4], 1
    %25 = vsyncpa %s24, 0
    loop: start=0, step=1, limit=4
    $region2: #{tpu_custom_call.1} parent=1 // loop_pre_header
      _
    $region3: #{tpu_custom_call.1} parent=1 // loop_header
      %s27 = sphi 0, %s31
      %p28 = scmp.ge.s32.totalorder %s27, 4
      %s37 = sphi 0, %s39
      %s40 = sphi 0, %s37
      %s41 = sphi 0, %s40
      %s57 = sphi 0, %s41
      %s63 = sphi 0, %s65
      %s66 = sphi 0, %s63
      %s67 = sphi 0, %s66
      %s83 = sphi 0, %s67
      %s89 = sphi 0, %s91
      %s92 = sphi 0, %s89
      %s93 = sphi 0, %s92
      %s109 = sphi 0, %s93
      %s115 = sphi 0, %s117
      %s118 = sphi 0, %s115
      %s119 = sphi 0, %s118
      %s135 = sphi 0, %s119
      %s141 = sphi 0, %s143
      %s144 = sphi 0, %s141
      %s145 = sphi 0, %s144
      %s161 = sphi 0, %s145
      %s167 = sphi 0, %s169
      %s170 = sphi 0, %s167
      %s171 = sphi 0, %s170
      %s187 = sphi 0, %s171
      %s193 = sphi 0, %s195
      %s196 = sphi 0, %s193
      %s197 = sphi 0, %s196
      %s213 = sphi 0, %s197
    $region4: #{tpu_custom_call.1} parent=1 // loop_header_branch
      %30 = sbr.rel (%p28) target = $region8
    $region5: #{tpu_custom_call.1} parent=1 // loop_body
      %s32 = ssub.s32 %s27, 1
      %s33 = ssub.s32 %s27, 2
      %s34 = sadd.s32 %s27, 1
      %s35 = ssub.s32 %s27, %s34
      %p36 = scmp.eq.s32.totalorder %s35, 0
      %s38 = sadd.s32 %s37, 1
      %s39 = scalar_select %p36, %s37, %s38
      %p42 = pneg %p36
      %p43 = scmp.eq.s32.totalorder %s27, 1
      %p44 = por %p42, %p43
      %p45 = scmp.ne.s32.totalorder %s37, %s40
      %p46 = scmp.eq.s32.totalorder %s27, 0
      %p47 = por %p45, %p46
      %p48 = scmp.ne.s32.totalorder %s37, %s40
      %p49 = scmp.eq.s32.totalorder %s32, 1
      %p50 = por %p48, %p49
      %p51 = scmp.ne.s32.totalorder %s40, %s41
      %p52 = scmp.eq.s32.totalorder %s32, 0
      %p53 = por %p51, %p52
      %p54 = scmp.ne.s32.totalorder %s40, %s41
      %p55 = scmp.eq.s32.totalorder %s33, 1
      %p56 = por %p54, %p55
      %p58 = scmp.ne.s32.totalorder %s41, %s57
      %p59 = scmp.eq.s32.totalorder %s33, 0
      %p60 = por %p58, %p59
      %s61 = ssub.s32 %s27, %s34
      %p62 = scmp.eq.s32.totalorder %s61, 0
      %s64 = sadd.s32 %s63, 1
      %s65 = scalar_select %p62, %s63, %s64
      %p68 = pneg %p62
      %p69 = scmp.eq.s32.totalorder %s27, 1
      %p70 = por %p68, %p69
      %p71 = scmp.ne.s32.totalorder %s63, %s66
      %p72 = scmp.eq.s32.totalorder %s27, 0
      %p73 = por %p71, %p72
      %p74 = scmp.ne.s32.totalorder %s63, %s66
      %p75 = scmp.eq.s32.totalorder %s32, 1
      %p76 = por %p74, %p75
      %p77 = scmp.ne.s32.totalorder %s66, %s67
      %p78 = scmp.eq.s32.totalorder %s32, 0
      %p79 = por %p77, %p78
      %p80 = scmp.ne.s32.totalorder %s66, %s67
      %p81 = scmp.eq.s32.totalorder %s33, 1
      %p82 = por %p80, %p81
      %p84 = scmp.ne.s32.totalorder %s67, %s83
      %p85 = scmp.eq.s32.totalorder %s33, 0
      %p86 = por %p84, %p85
      %s87 = ssub.s32 %s27, %s34
      %p88 = scmp.eq.s32.totalorder %s87, 0
      %s90 = sadd.s32 %s89, 1
      %s91 = scalar_select %p88, %s89, %s90
      %p94 = pneg %p88
      %p95 = scmp.eq.s32.totalorder %s27, 1
      %p96 = por %p94, %p95
      %p97 = scmp.ne.s32.totalorder %s89, %s92
      %p98 = scmp.eq.s32.totalorder %s27, 0
      %p99 = por %p97, %p98
      %p100 = scmp.ne.s32.totalorder %s89, %s92
      %p101 = scmp.eq.s32.totalorder %s32, 1
      %p102 = por %p100, %p101
      %p103 = scmp.ne.s32.totalorder %s92, %s93
      %p104 = scmp.eq.s32.totalorder %s32, 0
      %p105 = por %p103, %p104
      %p106 = scmp.ne.s32.totalorder %s92, %s93
      %p107 = scmp.eq.s32.totalorder %s33, 1
      %p108 = por %p106, %p107
      %p110 = scmp.ne.s32.totalorder %s93, %s109
      %p111 = scmp.eq.s32.totalorder %s33, 0
      %p112 = por %p110, %p111
      %s113 = ssub.s32 %s27, %s34
      %p114 = scmp.eq.s32.totalorder %s113, 0
      %s116 = sadd.s32 %s115, 1
      %s117 = scalar_select %p114, %s115, %s116
      %p120 = pneg %p114
      %p121 = scmp.eq.s32.totalorder %s27, 1
      %p122 = por %p120, %p121
      %p123 = scmp.ne.s32.totalorder %s115, %s118
      %p124 = scmp.eq.s32.totalorder %s27, 0
      %p125 = por %p123, %p124
      %p126 = scmp.ne.s32.totalorder %s115, %s118
      %p127 = scmp.eq.s32.totalorder %s32, 1
      %p128 = por %p126, %p127
      %p129 = scmp.ne.s32.totalorder %s118, %s119
      %p130 = scmp.eq.s32.totalorder %s32, 0
      %p131 = por %p129, %p130
      %p132 = scmp.ne.s32.totalorder %s118, %s119
      %p133 = scmp.eq.s32.totalorder %s33, 1
      %p134 = por %p132, %p133
      %p136 = scmp.ne.s32.totalorder %s119, %s135
      %p137 = scmp.eq.s32.totalorder %s33, 0
      %p138 = por %p136, %p137
      %s139 = ssub.s32 %s27, %s34
      %p140 = scmp.eq.s32.totalorder %s139, 0
      %s142 = sadd.s32 %s141, 1
      %s143 = scalar_select %p140, %s141, %s142
      %p146 = pneg %p140
      %p147 = scmp.eq.s32.totalorder %s27, 1
      %p148 = por %p146, %p147
      %p149 = scmp.ne.s32.totalorder %s141, %s144
      %p150 = scmp.eq.s32.totalorder %s27, 0
      %p151 = por %p149, %p150
      %p152 = scmp.ne.s32.totalorder %s141, %s144
      %p153 = scmp.eq.s32.totalorder %s32, 1
      %p154 = por %p152, %p153
      %p155 = scmp.ne.s32.totalorder %s144, %s145
      %p156 = scmp.eq.s32.totalorder %s32, 0
      %p157 = por %p155, %p156
      %p158 = scmp.ne.s32.totalorder %s144, %s145
      %p159 = scmp.eq.s32.totalorder %s33, 1
      %p160 = por %p158, %p159
      %p162 = scmp.ne.s32.totalorder %s145, %s161
      %p163 = scmp.eq.s32.totalorder %s33, 0
      %p164 = por %p162, %p163
      %s165 = ssub.s32 %s27, %s34
      %p166 = scmp.eq.s32.totalorder %s165, 0
      %s168 = sadd.s32 %s167, 1
      %s169 = scalar_select %p166, %s167, %s168
      %p172 = pneg %p166
      %p173 = scmp.eq.s32.totalorder %s27, 1
      %p174 = por %p172, %p173
      %p175 = scmp.ne.s32.totalorder %s167, %s170
      %p176 = scmp.eq.s32.totalorder %s27, 0
      %p177 = por %p175, %p176
      %p178 = scmp.ne.s32.totalorder %s167, %s170
      %p179 = scmp.eq.s32.totalorder %s32, 1
      %p180 = por %p178, %p179
      %p181 = scmp.ne.s32.totalorder %s170, %s171
      %p182 = scmp.eq.s32.totalorder %s32, 0
      %p183 = por %p181, %p182
      %p184 = scmp.ne.s32.totalorder %s170, %s171
      %p185 = scmp.eq.s32.totalorder %s33, 1
      %p186 = por %p184, %p185
      %p188 = scmp.ne.s32.totalorder %s171, %s187
      %p189 = scmp.eq.s32.totalorder %s33, 0
      %p190 = por %p188, %p189
      %s191 = ssub.s32 %s27, %s34
      %p192 = scmp.eq.s32.totalorder %s191, 0
      %s194 = sadd.s32 %s193, 1
      %s195 = scalar_select %p192, %s193, %s194
      %p198 = pneg %p192
      %p199 = scmp.eq.s32.totalorder %s27, 1
      %p200 = por %p198, %p199
      %p201 = scmp.ne.s32.totalorder %s193, %s196
      %p202 = scmp.eq.s32.totalorder %s27, 0
      %p203 = por %p201, %p202
      %p204 = scmp.ne.s32.totalorder %s193, %s196
      %p205 = scmp.eq.s32.totalorder %s32, 1
      %p206 = por %p204, %p205
      %p207 = scmp.ne.s32.totalorder %s196, %s197
      %p208 = scmp.eq.s32.totalorder %s32, 0
      %p209 = por %p207, %p208
      %p210 = scmp.ne.s32.totalorder %s196, %s197
      %p211 = scmp.eq.s32.totalorder %s33, 1
      %p212 = por %p210, %p211
      %p214 = scmp.ne.s32.totalorder %s197, %s213
      %p215 = scmp.eq.s32.totalorder %s33, 0
      %p216 = por %p214, %p215
      %p217 = scmp.le.s32.totalorder 1, %s27
      %p218 = scmp.lt.s32.totalorder %s27, 3
      %p219 = pnand %p217, %p218
      %p220 = pneg %p219
      // Predicated region
      $region9: #{tpu_custom_call.1} parent=5 // pred_check
        _
      $region10: #{tpu_custom_call.1} parent=5 // pred_check_branch
        %222 = sbr.rel (%p219) target = $region12
      $region11: #{tpu_custom_call.1} parent=5 // pred_region
        %s223 = ssub.s32 %s27, 1
      $region12: #{tpu_custom_call.1} parent=5 // pred_fallthru
        _
      %p224 = scmp.lt.s32.totalorder %s27, 2
      // Predicated region
      $region13: #{tpu_custom_call.1} parent=5 // pred_check
        %p225 = pneg %p224
      $region14: #{tpu_custom_call.1} parent=5 // pred_check_branch
        %227 = sbr.rel (%p225) target = $region16
      $region15: #{tpu_custom_call.1} parent=5 // pred_region
        // Predicated region
        $region17: #{tpu_custom_call.1} parent=15 // pred_check
          %p228 = pneg %p47
        $region18: #{tpu_custom_call.1} parent=15 // pred_check_branch
          %230 = sbr.rel (%p228) target = $region20
        $region19: #{tpu_custom_call.1} parent=15 // pred_region
          %s231 = sand.u32 %s37, 1
          %s232 = scalar_lea.sflag [#allocation3], %s231
          %s233 = sand.u32 %s37, 1
          %s234 = smul.addr %s233, 16
          %s235 = scalar_lea.vmem [#allocation2], %s234
          %s236 = smul.u32 2, %s27
          %238 = vsyncadd %s232, 0
          %s239 = smul.addr %s236, 8
          %s240 = scalar_lea.hbm %s0, %s239
          %s241 = sshll.u32 %s240, 4
          %s242 = int_to_ptr.hbm [resolvable:$true] %s241
          %s243 = sshll.u32 %s235, 4
          %s244 = int_to_ptr.vmem [resolvable:$true] %s243
          %249 = dma.hbm_to_vmem [thread:$0]  %s242, 256, %s244, %s232, 128, 128, 8
        $region20: #{tpu_custom_call.1} parent=15 // pred_fallthru
          _
        // Predicated region
        $region21: #{tpu_custom_call.1} parent=15 // pred_check
          %p250 = pneg %p73
        $region22: #{tpu_custom_call.1} parent=15 // pred_check_branch
          %252 = sbr.rel (%p250) target = $region24
        $region23: #{tpu_custom_call.1} parent=15 // pred_region
          %s253 = sand.u32 %s27, 1
          %s254 = scalar_lea.sflag [#allocation6], %s253
          %s255 = sand.u32 %s63, 1
          %s256 = smul.addr %s255, 16
          %s257 = scalar_lea.vmem [#allocation5], %s256
          %s258 = smul.u32 2, %s27
          %260 = vsyncadd %s254, 0
          %s261 = smul.addr %s258, 8
          %s262 = scalar_lea.hbm %s1, %s261
          %s263 = sshll.u32 %s262, 4
          %s264 = int_to_ptr.hbm [resolvable:$true] %s263
          %s265 = sshll.u32 %s257, 4
          %s266 = int_to_ptr.vmem [resolvable:$true] %s265
          %271 = dma.hbm_to_vmem [thread:$0]  %s264, 256, %s266, %s254, 128, 128, 8
        $region24: #{tpu_custom_call.1} parent=15 // pred_fallthru
          _
        // Predicated region
        $region25: #{tpu_custom_call.1} parent=15 // pred_check
          %p272 = pneg %p99
        $region26: #{tpu_custom_call.1} parent=15 // pred_check_branch
          %274 = sbr.rel (%p272) target = $region28
        $region27: #{tpu_custom_call.1} parent=15 // pred_region
          %s275 = sand.u32 %s27, 1
          %s276 = scalar_lea.sflag [#allocation6], %s275
          %s277 = sand.u32 %s89, 1
          %s278 = smul.addr %s277, 96
          %s279 = scalar_lea.vmem [#allocation7], %s278
          %s280 = smul.u32 2, %s27
          %282 = vsyncadd %s276, 0
          %s283 = smul.addr %s280, 6
          %s284 = smul.addr %s283, 8
          %s285 = scalar_lea.hbm %s2, %s284
          %s286 = sshll.u32 %s285, 4
          %s287 = int_to_ptr.hbm [resolvable:$true] %s286
          %s288 = sshll.u32 %s279, 4
          %s289 = int_to_ptr.vmem [resolvable:$true] %s288
          %294 = dma.hbm_to_vmem [thread:$0]  %s287, 1536, %s289, %s276, 384, 384, 24
        $region28: #{tpu_custom_call.1} parent=15 // pred_fallthru
          _
        // Predicated region
        $region29: #{tpu_custom_call.1} parent=15 // pred_check
          %p295 = pneg %p125
        $region30: #{tpu_custom_call.1} parent=15 // pred_check_branch
          %297 = sbr.rel (%p295) target = $region32
        $region31: #{tpu_custom_call.1} parent=15 // pred_region
          %s298 = sand.u32 %s27, 1
          %s299 = scalar_lea.sflag [#allocation9], %s298
          %s300 = sand.u32 %s115, 1
          %s301 = smul.addr %s300, 512
          %s302 = scalar_lea.vmem [#allocation8], %s301
          %s303 = smul.u32 2, %s27
          %305 = vsyncadd %s299, 0
          %s306 = smul.addr %s303, 32
          %s307 = smul.addr %s306, 8
          %s308 = scalar_lea.hbm %s3, %s307
          %s309 = sshll.u32 %s308, 4
          %s310 = int_to_ptr.hbm [resolvable:$true] %s309
          %s311 = sshll.u32 %s302, 4
          %s312 = int_to_ptr.vmem [resolvable:$true] %s311
          %317 = dma.hbm_to_vmem [thread:$0]  %s310, 8192, %s312, %s299, 256, 256, 16
        $region32: #{tpu_custom_call.1} parent=15 // pred_fallthru
          _
        // Predicated region
        $region33: #{tpu_custom_call.1} parent=15 // pred_check
          %p318 = pneg %p151
        $region34: #{tpu_custom_call.1} parent=15 // pred_check_branch
          %320 = sbr.rel (%p318) target = $region36
        $region35: #{tpu_custom_call.1} parent=15 // pred_region
          %s321 = sand.u32 %s27, 1
          %s322 = scalar_lea.sflag [#allocation9], %s321
          %s323 = sand.u32 %s141, 1
          %s324 = smul.addr %s323, 256
          %s325 = scalar_lea.vmem [#allocation10], %s324
          %s326 = smul.u32 2, %s27
          %328 = vsyncadd %s322, 0
          %s329 = smul.addr %s326, 16
          %s330 = smul.addr %s329, 8
          %s331 = scalar_lea.hbm %s4, %s330
          %s332 = sshll.u32 %s331, 4
          %s333 = int_to_ptr.hbm [resolvable:$true] %s332
          %s334 = sshll.u32 %s325, 4
          %s335 = int_to_ptr.vmem [resolvable:$true] %s334
          %340 = dma.hbm_to_vmem [thread:$0]  %s333, 4096, %s335, %s322, 128, 128, 8
        $region36: #{tpu_custom_call.1} parent=15 // pred_fallthru
          _
        // Predicated region
        $region37: #{tpu_custom_call.1} parent=15 // pred_check
          %p341 = pneg %p177
        $region38: #{tpu_custom_call.1} parent=15 // pred_check_branch
          %343 = sbr.rel (%p341) target = $region40
        $region39: #{tpu_custom_call.1} parent=15 // pred_region
          %s344 = sand.u32 %s167, 1
          %s345 = scalar_lea.sflag [#allocation12], %s344
          %s346 = sand.u32 %s167, 1
          %s347 = smul.addr %s346, 6
          %s348 = scalar_lea.vmem [#allocation11], %s347
          %s349 = smul.u32 2, %s27
          %351 = vsyncadd %s345, 0
          %s352 = smul.addr %s349, 3
          %s353 = scalar_lea.hbm %s5, %s352
          %s354 = sshll.u32 %s353, 4
          %s355 = int_to_ptr.hbm [resolvable:$true] %s354
          %s356 = sshll.u32 %s348, 4
          %s357 = int_to_ptr.vmem [resolvable:$true] %s356
          %362 = dma.hbm_to_vmem [thread:$0]  %s355, 96, %s357, %s345, 48, 48, 3
        $region40: #{tpu_custom_call.1} parent=15 // pred_fallthru
          _
      $region16: #{tpu_custom_call.1} parent=5 // pred_fallthru
        _
      %p363 = scmp.le.s32.totalorder 1, %s27
      %p364 = scmp.lt.s32.totalorder %s27, 3
      %p365 = pnand %p363, %p364
      %p366 = pneg %p365
      // Predicated region
      $region41: #{tpu_custom_call.1} parent=5 // pred_check
        _
      $region42: #{tpu_custom_call.1} parent=5 // pred_check_branch
        %368 = sbr.rel (%p365) target = $region44
      $region43: #{tpu_custom_call.1} parent=5 // pred_region
        %s369 = ssub.s32 %s27, 1
        %s370 = sand.u32 %s40, 1
        %s371 = scalar_lea.sflag [#allocation3], %s370
        %s372 = sand.u32 %s40, 1
        %s373 = smul.addr %s372, 16
        %s374 = scalar_lea.vmem [#allocation2], %s373
        // Predicated region
        $region45: #{tpu_custom_call.1} parent=43 // pred_check
          %p375 = pneg %p53
        $region46: #{tpu_custom_call.1} parent=43 // pred_check_branch
          %377 = sbr.rel (%p375) target = $region48
        $region47: #{tpu_custom_call.1} parent=43 // pred_region
          %379 = dma.done %s371, 256
        $region48: #{tpu_custom_call.1} parent=43 // pred_fallthru
          _
        %s380 = sand.u32 %s32, 1
        %s381 = scalar_lea.sflag [#allocation6], %s380
        %s382 = sand.u32 %s66, 1
        %s383 = smul.addr %s382, 16
        %s384 = scalar_lea.vmem [#allocation5], %s383
        // Predicated region
        $region49: #{tpu_custom_call.1} parent=43 // pred_check
          %p385 = pneg %p79
        $region50: #{tpu_custom_call.1} parent=43 // pred_check_branch
          %387 = sbr.rel (%p385) target = $region52
        $region51: #{tpu_custom_call.1} parent=43 // pred_region
          %389 = dma.done %s381, 256
        $region52: #{tpu_custom_call.1} parent=43 // pred_fallthru
          _
        %s390 = sand.u32 %s32, 1
        %s391 = scalar_lea.sflag [#allocation6], %s390
        %s392 = sand.u32 %s92, 1
        %s393 = smul.addr %s392, 96
        %s394 = scalar_lea.vmem [#allocation7], %s393
        // Predicated region
        $region53: #{tpu_custom_call.1} parent=43 // pred_check
          %p395 = pneg %p105
        $region54: #{tpu_custom_call.1} parent=43 // pred_check_branch
          %397 = sbr.rel (%p395) target = $region56
        $region55: #{tpu_custom_call.1} parent=43 // pred_region
          %399 = dma.done %s391, 1536
        $region56: #{tpu_custom_call.1} parent=43 // pred_fallthru
          _
        %s400 = sand.u32 %s32, 1
        %s401 = scalar_lea.sflag [#allocation9], %s400
        %s402 = sand.u32 %s118, 1
        %s403 = smul.addr %s402, 512
        %s404 = scalar_lea.vmem [#allocation8], %s403
        // Predicated region
        $region57: #{tpu_custom_call.1} parent=43 // pred_check
          %p405 = pneg %p131
        $region58: #{tpu_custom_call.1} parent=43 // pred_check_branch
          %407 = sbr.rel (%p405) target = $region60
        $region59: #{tpu_custom_call.1} parent=43 // pred_region
          %409 = dma.done %s401, 8192
        $region60: #{tpu_custom_call.1} parent=43 // pred_fallthru
          _
        %s410 = sand.u32 %s32, 1
        %s411 = scalar_lea.sflag [#allocation9], %s410
        %s412 = sand.u32 %s144, 1
        %s413 = smul.addr %s412, 256
        %s414 = scalar_lea.vmem [#allocation10], %s413
        // Predicated region
        $region61: #{tpu_custom_call.1} parent=43 // pred_check
          %p415 = pneg %p157
        $region62: #{tpu_custom_call.1} parent=43 // pred_check_branch
          %417 = sbr.rel (%p415) target = $region64
        $region63: #{tpu_custom_call.1} parent=43 // pred_region
          %419 = dma.done %s411, 4096
        $region64: #{tpu_custom_call.1} parent=43 // pred_fallthru
          _
        %s420 = sand.u32 %s170, 1
        %s421 = scalar_lea.sflag [#allocation12], %s420
        %s422 = sand.u32 %s170, 1
        %s423 = smul.addr %s422, 6
        %s424 = scalar_lea.vmem [#allocation11], %s423
        // Predicated region
        $region65: #{tpu_custom_call.1} parent=43 // pred_check
          %p425 = pneg %p183
        $region66: #{tpu_custom_call.1} parent=43 // pred_check_branch
          %427 = sbr.rel (%p425) target = $region68
        $region67: #{tpu_custom_call.1} parent=43 // pred_region
          %429 = dma.done %s421, 96
        $region68: #{tpu_custom_call.1} parent=43 // pred_fallthru
          _
        %s430 = sand.u32 %s40, 1
        %s431 = scalar_lea.sflag [#allocation3], %s430
        %s432 = sand.u32 %s40, 1
        %s433 = smul.addr %s432, 16
        %s434 = scalar_lea.vmem [#allocation2], %s433
        %p435 = pneg %p53
        %p436 = pneg %p50
        %s437 = sand.u32 %s32, 1
        %s438 = scalar_lea.sflag [#allocation6], %s437
        %s439 = sand.u32 %s66, 1
        %s440 = smul.addr %s439, 16
        %s441 = scalar_lea.vmem [#allocation5], %s440
        %p442 = pneg %p79
        %p443 = pneg %p76
        %s444 = sand.u32 %s32, 1
        %s445 = scalar_lea.sflag [#allocation6], %s444
        %s446 = sand.u32 %s92, 1
        %s447 = smul.addr %s446, 96
        %s448 = scalar_lea.vmem [#allocation7], %s447
        %p449 = pneg %p105
        %p450 = pneg %p102
        %s451 = sand.u32 %s32, 1
        %s452 = scalar_lea.sflag [#allocation9], %s451
        %s453 = sand.u32 %s118, 1
        %s454 = smul.addr %s453, 512
        %s455 = scalar_lea.vmem [#allocation8], %s454
        %p456 = pneg %p131
        %p457 = pneg %p128
        %s458 = sand.u32 %s32, 1
        %s459 = scalar_lea.sflag [#allocation9], %s458
        %s460 = sand.u32 %s144, 1
        %s461 = smul.addr %s460, 256
        %s462 = scalar_lea.vmem [#allocation10], %s461
        %p463 = pneg %p157
        %p464 = pneg %p154
        %s465 = sand.u32 %s170, 1
        %s466 = scalar_lea.sflag [#allocation12], %s465
        %s467 = sand.u32 %s170, 1
        %s468 = smul.addr %s467, 6
        %s469 = scalar_lea.vmem [#allocation11], %s468
        %p470 = pneg %p183
        %p471 = pneg %p180
        %p472 = pneg %p209
        %p473 = pneg %p206
        %s474 = sand.u32 %s196, 1
        %s475 = scalar_lea.sflag [#allocation4], %s474
        %s476 = sand.u32 %s196, 1
        %s477 = smul.addr %s476, 16
        %s478 = scalar_lea.vmem [#allocation13], %s477
        %s479 = smul.u32 2, %s32
        %s480 = smul.u32 2, %s32
        %s481 = smul.u32 2, %s32
        %s482 = smul.u32 2, %s32
        %s483 = smul.u32 2, %s32
        %s484 = smul.u32 2, %s32
        %s485 = smul.u32 2, %s32
        %v486 = vld [vmem:[%s374] sm:$0xff]
        %v487 = vld [vmem:[%s374 + $0x8] sm:$0xff]
        %v488 = vld [vmem:[%s384] sm:$0xff]
        %v489 = vld [vmem:[%s384 + $0x8] sm:$0xff]
        %v490 = vld [vmem:[%s394] sm:$0xff]
        %v491 = vld [vmem:[%s394 + $0x8] sm:$0xff]
        %v492 = vld [vmem:[%s394 + $0x10] sm:$0xff]
        %v493 = vld [vmem:[%s394 + $0x18] sm:$0xff]
        %v494 = vld [vmem:[%s394 + $0x20] sm:$0xff]
        %v495 = vld [vmem:[%s394 + $0x28] sm:$0xff]
        %v496 = vld [vmem:[%s394 + $0x30] sm:$0xff]
        %v497 = vld [vmem:[%s394 + $0x38] sm:$0xff]
        %v498 = vld [vmem:[%s394 + $0x40] sm:$0xff]
        %v499 = vld [vmem:[%s394 + $0x48] sm:$0xff]
        %v500 = vld [vmem:[%s394 + $0x50] sm:$0xff]
        %v501 = vld [vmem:[%s394 + $0x58] sm:$0xff]
        %v502 = vld [vmem:[%s424] sm:$0x7]
        %v503 = vld [vmem:[%s424 + $0x3] sm:$0x7]
        %v506 = vperm.slane %v502, 0
        %v507 = vperm.slane %v502, 1
        %v508 = vperm.slane %v502, 2
        %v509 = vperm.slane %v503, 0
        %v510 = vperm.slane %v503, 1
        %v511 = vperm.slane %v503, 2
        %vm518 = vcmask 130048
        %v520 = vsel %vm518, %v486, 0
        %522 = vmatpush.msra.mxu0 0.0
        %523 = vmatpush.msra.mxu0 0.0
        %524 = vmatpush.msra.mxu0 0.0
        %525 = vmatpush.msra.mxu0 0.0
        %526 = vmatpush.msra.mxu0 0.0
        %527 = vmatpush.msra.mxu0 0.0
        %528 = vmatpush.msra.mxu0 0.0
        %529 = vmatpush.msra.mxu0 0.0
        %530 = vmatpush.msra.mxu0 0.0
        %531 = vmatpush.msra.mxu0 0.0
        %532 = vmatpush.msra.mxu0 0.0
        %533 = vmatpush.msra.mxu0 0.0
        %534 = vmatpush.msra.mxu0 0.0
        %535 = vmatpush.msra.mxu0 0.0
        %536 = vmatpush.msra.mxu0 %v493
        %537 = vmatpush.msra.mxu0 %v490
        %538 = vmatmul.f32.gmra.mxu0 %v520
        %v539 = vpop.f32.mrf.mxu0
        %v540 = vadd.f32 %v506, %v539
        %541 = vdwg.mxu0
        %542 = vmatpush.msra.mxu0 0.0
        %543 = vmatpush.msra.mxu0 0.0
        %544 = vmatpush.msra.mxu0 0.0
        %545 = vmatpush.msra.mxu0 0.0
        %546 = vmatpush.msra.mxu0 0.0
        %547 = vmatpush.msra.mxu0 0.0
        %548 = vmatpush.msra.mxu0 0.0
        %549 = vmatpush.msra.mxu0 0.0
        %550 = vmatpush.msra.mxu0 0.0
        %551 = vmatpush.msra.mxu0 0.0
        %552 = vmatpush.msra.mxu0 0.0
        %553 = vmatpush.msra.mxu0 0.0
        %554 = vmatpush.msra.mxu0 0.0
        %555 = vmatpush.msra.mxu0 0.0
        %556 = vmatpush.msra.mxu0 %v494
        %557 = vmatpush.msra.mxu0 %v491
        %558 = vmatmul.f32.gmra.mxu0 %v520
        %v559 = vpop.f32.mrf.mxu0
        %v560 = vadd.f32 %v507, %v559
        %561 = vdwg.mxu0
        %562 = vmatpush.msra.mxu0 0.0
        %563 = vmatpush.msra.mxu0 0.0
        %564 = vmatpush.msra.mxu0 0.0
        %565 = vmatpush.msra.mxu0 0.0
        %566 = vmatpush.msra.mxu0 0.0
        %567 = vmatpush.msra.mxu0 0.0
        %568 = vmatpush.msra.mxu0 0.0
        %569 = vmatpush.msra.mxu0 0.0
        %570 = vmatpush.msra.mxu0 0.0
        %571 = vmatpush.msra.mxu0 0.0
        %572 = vmatpush.msra.mxu0 0.0
        %573 = vmatpush.msra.mxu0 0.0
        %574 = vmatpush.msra.mxu0 0.0
        %575 = vmatpush.msra.mxu0 0.0
        %576 = vmatpush.msra.mxu0 %v495
        %577 = vmatpush.msra.mxu0 %v492
        %578 = vmatmul.f32.gmra.mxu0 %v520
        %v579 = vpop.f32.mrf.mxu0
        %v580 = vadd.f32 %v508, %v579
        %581 = vdwg.mxu0
        %v583 = vsel %vm518, %v487, 0
        %585 = vmatpush.msra.mxu0 0.0
        %586 = vmatpush.msra.mxu0 0.0
        %587 = vmatpush.msra.mxu0 0.0
        %588 = vmatpush.msra.mxu0 0.0
        %589 = vmatpush.msra.mxu0 0.0
        %590 = vmatpush.msra.mxu0 0.0
        %591 = vmatpush.msra.mxu0 0.0
        %592 = vmatpush.msra.mxu0 0.0
        %593 = vmatpush.msra.mxu0 0.0
        %594 = vmatpush.msra.mxu0 0.0
        %595 = vmatpush.msra.mxu0 0.0
        %596 = vmatpush.msra.mxu0 0.0
        %597 = vmatpush.msra.mxu0 0.0
        %598 = vmatpush.msra.mxu0 0.0
        %599 = vmatpush.msra.mxu0 %v499
        %600 = vmatpush.msra.mxu0 %v496
        %601 = vmatmul.f32.gmra.mxu0 %v583
        %v602 = vpop.f32.mrf.mxu0
        %v603 = vadd.f32 %v509, %v602
        %604 = vdwg.mxu0
        %605 = vmatpush.msra.mxu0 0.0
        %606 = vmatpush.msra.mxu0 0.0
        %607 = vmatpush.msra.mxu0 0.0
        %608 = vmatpush.msra.mxu0 0.0
        %609 = vmatpush.msra.mxu0 0.0
        %610 = vmatpush.msra.mxu0 0.0
        %611 = vmatpush.msra.mxu0 0.0
        %612 = vmatpush.msra.mxu0 0.0
        %613 = vmatpush.msra.mxu0 0.0
        %614 = vmatpush.msra.mxu0 0.0
        %615 = vmatpush.msra.mxu0 0.0
        %616 = vmatpush.msra.mxu0 0.0
        %617 = vmatpush.msra.mxu0 0.0
        %618 = vmatpush.msra.mxu0 0.0
        %619 = vmatpush.msra.mxu0 %v500
        %620 = vmatpush.msra.mxu0 %v497
        %621 = vmatmul.f32.gmra.mxu0 %v583
        %v622 = vpop.f32.mrf.mxu0
        %v623 = vadd.f32 %v510, %v622
        %624 = vdwg.mxu0
        %625 = vmatpush.msra.mxu0 0.0
        %626 = vmatpush.msra.mxu0 0.0
        %627 = vmatpush.msra.mxu0 0.0
        %628 = vmatpush.msra.mxu0 0.0
        %629 = vmatpush.msra.mxu0 0.0
        %630 = vmatpush.msra.mxu0 0.0
        %631 = vmatpush.msra.mxu0 0.0
        %632 = vmatpush.msra.mxu0 0.0
        %633 = vmatpush.msra.mxu0 0.0
        %634 = vmatpush.msra.mxu0 0.0
        %635 = vmatpush.msra.mxu0 0.0
        %636 = vmatpush.msra.mxu0 0.0
        %637 = vmatpush.msra.mxu0 0.0
        %638 = vmatpush.msra.mxu0 0.0
        %639 = vmatpush.msra.mxu0 %v501
        %640 = vmatpush.msra.mxu0 %v498
        %641 = vmatmul.f32.gmra.mxu0 %v583
        %v642 = vpop.f32.mrf.mxu0
        %v643 = vadd.f32 %v511, %v642
        %644 = vdwg.mxu0
        %v645 = vld [vmem:[%s404] sm:$0xff]
        %v646 = vld [vmem:[%s404 + $0x8] sm:$0xff]
        %v647 = vld [vmem:[%s404 + $0x10] sm:$0xff]
        %v648 = vld [vmem:[%s404 + $0x18] sm:$0xff]
        %v649 = vld [vmem:[%s404 + $0x20] sm:$0xff]
        %v650 = vld [vmem:[%s404 + $0x28] sm:$0xff]
        %v651 = vld [vmem:[%s404 + $0x30] sm:$0xff]
        %v652 = vld [vmem:[%s404 + $0x38] sm:$0xff]
        %v653 = vld [vmem:[%s404 + $0x40] sm:$0xff]
        %v654 = vld [vmem:[%s404 + $0x48] sm:$0xff]
        %v655 = vld [vmem:[%s404 + $0x50] sm:$0xff]
        %v656 = vld [vmem:[%s404 + $0x58] sm:$0xff]
        %v657 = vld [vmem:[%s404 + $0x60] sm:$0xff]
        %v658 = vld [vmem:[%s404 + $0x68] sm:$0xff]
        %v659 = vld [vmem:[%s404 + $0x70] sm:$0xff]
        %v660 = vld [vmem:[%s404 + $0x78] sm:$0xff]
        %v661 = vld [vmem:[%s404 + $0x80] sm:$0xff]
        %v662 = vld [vmem:[%s404 + $0x88] sm:$0xff]
        %v663 = vld [vmem:[%s404 + $0x90] sm:$0xff]
        %v664 = vld [vmem:[%s404 + $0x98] sm:$0xff]
        %v665 = vld [vmem:[%s404 + $0xa0] sm:$0xff]
        %v666 = vld [vmem:[%s404 + $0xa8] sm:$0xff]
        %v667 = vld [vmem:[%s404 + $0xb0] sm:$0xff]
        %v668 = vld [vmem:[%s404 + $0xb8] sm:$0xff]
        %v669 = vld [vmem:[%s404 + $0xc0] sm:$0xff]
        %v670 = vld [vmem:[%s404 + $0xc8] sm:$0xff]
        %v671 = vld [vmem:[%s404 + $0xd0] sm:$0xff]
        %v672 = vld [vmem:[%s404 + $0xd8] sm:$0xff]
        %v673 = vld [vmem:[%s404 + $0xe0] sm:$0xff]
        %v674 = vld [vmem:[%s404 + $0xe8] sm:$0xff]
        %v675 = vld [vmem:[%s404 + $0xf0] sm:$0xff]
        %v676 = vld [vmem:[%s404 + $0xf8] sm:$0xff]
        %v677 = vld [vmem:[%s404 + $0x100] sm:$0xff]
        %v678 = vld [vmem:[%s404 + $0x108] sm:$0xff]
        %v679 = vld [vmem:[%s404 + $0x110] sm:$0xff]
        %v680 = vld [vmem:[%s404 + $0x118] sm:$0xff]
        %v681 = vld [vmem:[%s404 + $0x120] sm:$0xff]
        %v682 = vld [vmem:[%s404 + $0x128] sm:$0xff]
        %v683 = vld [vmem:[%s404 + $0x130] sm:$0xff]
        %v684 = vld [vmem:[%s404 + $0x138] sm:$0xff]
        %v685 = vld [vmem:[%s404 + $0x140] sm:$0xff]
        %v686 = vld [vmem:[%s404 + $0x148] sm:$0xff]
        %v687 = vld [vmem:[%s404 + $0x150] sm:$0xff]
        %v688 = vld [vmem:[%s404 + $0x158] sm:$0xff]
        %v689 = vld [vmem:[%s404 + $0x160] sm:$0xff]
        %v690 = vld [vmem:[%s404 + $0x168] sm:$0xff]
        %v691 = vld [vmem:[%s404 + $0x170] sm:$0xff]
        %v692 = vld [vmem:[%s404 + $0x178] sm:$0xff]
        %v693 = vld [vmem:[%s404 + $0x180] sm:$0xff]
        %v694 = vld [vmem:[%s404 + $0x188] sm:$0xff]
        %v695 = vld [vmem:[%s404 + $0x190] sm:$0xff]
        %v696 = vld [vmem:[%s404 + $0x198] sm:$0xff]
        %v697 = vld [vmem:[%s404 + $0x1a0] sm:$0xff]
        %v698 = vld [vmem:[%s404 + $0x1a8] sm:$0xff]
        %v699 = vld [vmem:[%s404 + $0x1b0] sm:$0xff]
        %v700 = vld [vmem:[%s404 + $0x1b8] sm:$0xff]
        %v701 = vld [vmem:[%s404 + $0x1c0] sm:$0xff]
        %v702 = vld [vmem:[%s404 + $0x1c8] sm:$0xff]
        %v703 = vld [vmem:[%s404 + $0x1d0] sm:$0xff]
        %v704 = vld [vmem:[%s404 + $0x1d8] sm:$0xff]
        %v705 = vld [vmem:[%s404 + $0x1e0] sm:$0xff]
        %v706 = vld [vmem:[%s404 + $0x1e8] sm:$0xff]
        %v707 = vld [vmem:[%s404 + $0x1f0] sm:$0xff]
        %v708 = vld [vmem:[%s404 + $0x1f8] sm:$0xff]
        %709 = vmatpush.msra.mxu0 %v675
        %710 = vmatpush.msra.mxu0 %v673
        %711 = vmatpush.msra.mxu0 %v671
        %712 = vmatpush.msra.mxu0 %v669
        %713 = vmatpush.msra.mxu0 %v667
        %714 = vmatpush.msra.mxu0 %v665
        %715 = vmatpush.msra.mxu0 %v663
        %716 = vmatpush.msra.mxu0 %v661
        %717 = vmatpush.msra.mxu0 %v659
        %718 = vmatpush.msra.mxu0 %v657
        %719 = vmatpush.msra.mxu0 %v655
        %720 = vmatpush.msra.mxu0 %v653
        %721 = vmatpush.msra.mxu0 %v651
        %722 = vmatpush.msra.mxu0 %v649
        %723 = vmatpush.msra.mxu0 %v647
        %724 = vmatpush.msra.mxu0 %v645
        %725 = vmatmul.f32.gmra.mxu0 %v488
        %v726 = vpop.f32.mrf.mxu0
        %v727 = vadd.f32 0.0, %v726
        %728 = vdwg.mxu0
        %729 = vmatpush.msra.mxu0 %v676
        %730 = vmatpush.msra.mxu0 %v674
        %731 = vmatpush.msra.mxu0 %v672
        %732 = vmatpush.msra.mxu0 %v670
        %733 = vmatpush.msra.mxu0 %v668
        %734 = vmatpush.msra.mxu0 %v666
        %735 = vmatpush.msra.mxu0 %v664
        %736 = vmatpush.msra.mxu0 %v662
        %737 = vmatpush.msra.mxu0 %v660
        %738 = vmatpush.msra.mxu0 %v658
        %739 = vmatpush.msra.mxu0 %v656
        %740 = vmatpush.msra.mxu0 %v654
        %741 = vmatpush.msra.mxu0 %v652
        %742 = vmatpush.msra.mxu0 %v650
        %743 = vmatpush.msra.mxu0 %v648
        %744 = vmatpush.msra.mxu0 %v646
        %745 = vmatmul.f32.gmra.mxu0 %v488
        %v746 = vpop.f32.mrf.mxu0
        %v747 = vadd.f32 0.0, %v746
        %748 = vdwg.mxu0
        %749 = vmatpush.msra.mxu0 %v707
        %750 = vmatpush.msra.mxu0 %v705
        %751 = vmatpush.msra.mxu0 %v703
        %752 = vmatpush.msra.mxu0 %v701
        %753 = vmatpush.msra.mxu0 %v699
        %754 = vmatpush.msra.mxu0 %v697
        %755 = vmatpush.msra.mxu0 %v695
        %756 = vmatpush.msra.mxu0 %v693
        %757 = vmatpush.msra.mxu0 %v691
        %758 = vmatpush.msra.mxu0 %v689
        %759 = vmatpush.msra.mxu0 %v687
        %760 = vmatpush.msra.mxu0 %v685
        %761 = vmatpush.msra.mxu0 %v683
        %762 = vmatpush.msra.mxu0 %v681
        %763 = vmatpush.msra.mxu0 %v679
        %764 = vmatpush.msra.mxu0 %v677
        %765 = vmatmul.f32.gmra.mxu0 %v489
        %v766 = vpop.f32.mrf.mxu0
        %v767 = vadd.f32 0.0, %v766
        %768 = vdwg.mxu0
        %769 = vmatpush.msra.mxu0 %v708
        %770 = vmatpush.msra.mxu0 %v706
        %771 = vmatpush.msra.mxu0 %v704
        %772 = vmatpush.msra.mxu0 %v702
        %773 = vmatpush.msra.mxu0 %v700
        %774 = vmatpush.msra.mxu0 %v698
        %775 = vmatpush.msra.mxu0 %v696
        %776 = vmatpush.msra.mxu0 %v694
        %777 = vmatpush.msra.mxu0 %v692
        %778 = vmatpush.msra.mxu0 %v690
        %779 = vmatpush.msra.mxu0 %v688
        %780 = vmatpush.msra.mxu0 %v686
        %781 = vmatpush.msra.mxu0 %v684
        %782 = vmatpush.msra.mxu0 %v682
        %783 = vmatpush.msra.mxu0 %v680
        %784 = vmatpush.msra.mxu0 %v678
        %785 = vmatmul.f32.gmra.mxu0 %v489
        %v786 = vpop.f32.mrf.mxu0
        %v787 = vadd.f32 0.0, %v786
        %788 = vdwg.mxu0
        %v789 = vadd.f32 %v540, %v727
        %v790 = vadd.f32 %v603, %v767
        %v791 = vxor.u32 %v789, 2147483648
        %v792 = vxor.u32 %v790, 2147483648
        %v793 = vmul.f32 %v791, 1.442695
        %v794 = vpow.pop %v793
        %v795 = vmul.f32 %v792, 1.442695
        %v796 = vpow.pop %v795
        %v797 = vadd.f32 %v794, 1.0
        %v798 = vadd.f32 %v796, 1.0
        %v799 = vrcp.pop %v797
        %v800 = vmul.f32 %v797, %v799
        %v801 = vsub.f32 1.0, %v800
        %v802 = vmul.f32 %v799, %v801
        %v803 = vadd.f32 %v799, %v802
        %vm804 = vweird.f32 %v797
        %vm805 = vweird.f32 %v799
        %vm806 = vmor %vm804, %vm805
        %v807 = vsel %vm806, %v799, %v803
        %v808 = vand.u32 2147483647, %v797
        %vm809 = vcmp.eq.f32.partialorder %v808, 8.507059e+37
        %v810 = vand.u32 %v797, 2147483648
        %v811 = vor.u32 1.1754944e-38, %v810
        %v812 = vsel %vm809, %v811, %v807
        %v813 = vmul.f32 1.0, %v812
        %v814 = vrcp.pop %v798
        %v815 = vmul.f32 %v798, %v814
        %v816 = vsub.f32 1.0, %v815
        %v817 = vmul.f32 %v814, %v816
        %v818 = vadd.f32 %v814, %v817
        %vm819 = vweird.f32 %v798
        %vm820 = vweird.f32 %v814
        %vm821 = vmor %vm819, %vm820
        %v822 = vsel %vm821, %v814, %v818
        %v823 = vand.u32 2147483647, %v798
        %vm824 = vcmp.eq.f32.partialorder %v823, 8.507059e+37
        %v825 = vand.u32 %v798, 2147483648
        %v826 = vor.u32 1.1754944e-38, %v825
        %v827 = vsel %vm824, %v826, %v822
        %v828 = vmul.f32 1.0, %v827
        %v829 = vadd.f32 %v560, %v747
        %v830 = vadd.f32 %v623, %v787
        %v831 = vxor.u32 %v829, 2147483648
        %v832 = vxor.u32 %v830, 2147483648
        %v833 = vmul.f32 %v831, 1.442695
        %v834 = vpow.pop %v833
        %v835 = vmul.f32 %v832, 1.442695
        %v836 = vpow.pop %v835
        %v837 = vadd.f32 %v834, 1.0
        %v838 = vadd.f32 %v836, 1.0
        %v839 = vrcp.pop %v837
        %v840 = vmul.f32 %v837, %v839
        %v841 = vsub.f32 1.0, %v840
        %v842 = vmul.f32 %v839, %v841
        %v843 = vadd.f32 %v839, %v842
        %vm844 = vweird.f32 %v837
        %vm845 = vweird.f32 %v839
        %vm846 = vmor %vm844, %vm845
        %v847 = vsel %vm846, %v839, %v843
        %v848 = vand.u32 2147483647, %v837
        %vm849 = vcmp.eq.f32.partialorder %v848, 8.507059e+37
        %v850 = vand.u32 %v837, 2147483648
        %v851 = vor.u32 1.1754944e-38, %v850
        %v852 = vsel %vm849, %v851, %v847
        %v853 = vmul.f32 1.0, %v852
        %v854 = vrcp.pop %v838
        %v855 = vmul.f32 %v838, %v854
        %v856 = vsub.f32 1.0, %v855
        %v857 = vmul.f32 %v854, %v856
        %v858 = vadd.f32 %v854, %v857
        %vm859 = vweird.f32 %v838
        %vm860 = vweird.f32 %v854
        %vm861 = vmor %vm859, %vm860
        %v862 = vsel %vm861, %v854, %v858
        %v863 = vand.u32 2147483647, %v838
        %vm864 = vcmp.eq.f32.partialorder %v863, 8.507059e+37
        %v865 = vand.u32 %v838, 2147483648
        %v866 = vor.u32 1.1754944e-38, %v865
        %v867 = vsel %vm864, %v866, %v862
        %v868 = vmul.f32 1.0, %v867
        %v869 = vmul.f32 %v813, %v488
        %v870 = vmul.f32 %v828, %v489
        %v871 = vld [vmem:[%s414] sm:$0xff]
        %v872 = vld [vmem:[%s414 + $0x8] sm:$0xff]
        %v873 = vld [vmem:[%s414 + $0x10] sm:$0xff]
        %v874 = vld [vmem:[%s414 + $0x18] sm:$0xff]
        %v875 = vld [vmem:[%s414 + $0x20] sm:$0xff]
        %v876 = vld [vmem:[%s414 + $0x28] sm:$0xff]
        %v877 = vld [vmem:[%s414 + $0x30] sm:$0xff]
        %v878 = vld [vmem:[%s414 + $0x38] sm:$0xff]
        %v879 = vld [vmem:[%s414 + $0x40] sm:$0xff]
        %v880 = vld [vmem:[%s414 + $0x48] sm:$0xff]
        %v881 = vld [vmem:[%s414 + $0x50] sm:$0xff]
        %v882 = vld [vmem:[%s414 + $0x58] sm:$0xff]
        %v883 = vld [vmem:[%s414 + $0x60] sm:$0xff]
        %v884 = vld [vmem:[%s414 + $0x68] sm:$0xff]
        %v885 = vld [vmem:[%s414 + $0x70] sm:$0xff]
        %v886 = vld [vmem:[%s414 + $0x78] sm:$0xff]
        %v887 = vld [vmem:[%s414 + $0x80] sm:$0xff]
        %v888 = vld [vmem:[%s414 + $0x88] sm:$0xff]
        %v889 = vld [vmem:[%s414 + $0x90] sm:$0xff]
        %v890 = vld [vmem:[%s414 + $0x98] sm:$0xff]
        %v891 = vld [vmem:[%s414 + $0xa0] sm:$0xff]
        %v892 = vld [vmem:[%s414 + $0xa8] sm:$0xff]
        %v893 = vld [vmem:[%s414 + $0xb0] sm:$0xff]
        %v894 = vld [vmem:[%s414 + $0xb8] sm:$0xff]
        %v895 = vld [vmem:[%s414 + $0xc0] sm:$0xff]
        %v896 = vld [vmem:[%s414 + $0xc8] sm:$0xff]
        %v897 = vld [vmem:[%s414 + $0xd0] sm:$0xff]
        %v898 = vld [vmem:[%s414 + $0xd8] sm:$0xff]
        %v899 = vld [vmem:[%s414 + $0xe0] sm:$0xff]
        %v900 = vld [vmem:[%s414 + $0xe8] sm:$0xff]
        %v901 = vld [vmem:[%s414 + $0xf0] sm:$0xff]
        %v902 = vld [vmem:[%s414 + $0xf8] sm:$0xff]
        %903 = vmatpush.msra.mxu0 %v886
        %904 = vmatpush.msra.mxu0 %v885
        %905 = vmatpush.msra.mxu0 %v884
        %906 = vmatpush.msra.mxu0 %v883
        %907 = vmatpush.msra.mxu0 %v882
        %908 = vmatpush.msra.mxu0 %v881
        %909 = vmatpush.msra.mxu0 %v880
        %910 = vmatpush.msra.mxu0 %v879
        %911 = vmatpush.msra.mxu0 %v878
        %912 = vmatpush.msra.mxu0 %v877
        %913 = vmatpush.msra.mxu0 %v876
        %914 = vmatpush.msra.mxu0 %v875
        %915 = vmatpush.msra.mxu0 %v874
        %916 = vmatpush.msra.mxu0 %v873
        %917 = vmatpush.msra.mxu0 %v872
        %918 = vmatpush.msra.mxu0 %v871
        %919 = vmatmul.f32.gmra.mxu0 %v869
        %v920 = vpop.f32.mrf.mxu0
        %v921 = vadd.f32 0.0, %v920
        %922 = vdwg.mxu0
        %923 = vmatpush.msra.mxu0 %v902
        %924 = vmatpush.msra.mxu0 %v901
        %925 = vmatpush.msra.mxu0 %v900
        %926 = vmatpush.msra.mxu0 %v899
        %927 = vmatpush.msra.mxu0 %v898
        %928 = vmatpush.msra.mxu0 %v897
        %929 = vmatpush.msra.mxu0 %v896
        %930 = vmatpush.msra.mxu0 %v895
        %931 = vmatpush.msra.mxu0 %v894
        %932 = vmatpush.msra.mxu0 %v893
        %933 = vmatpush.msra.mxu0 %v892
        %934 = vmatpush.msra.mxu0 %v891
        %935 = vmatpush.msra.mxu0 %v890
        %936 = vmatpush.msra.mxu0 %v889
        %937 = vmatpush.msra.mxu0 %v888
        %938 = vmatpush.msra.mxu0 %v887
        %939 = vmatmul.f32.gmra.mxu0 %v870
        %v940 = vpop.f32.mrf.mxu0
        %v941 = vadd.f32 0.0, %v940
        %942 = vdwg.mxu0
        %v943 = vadd.f32 %v580, %v921
        %v944 = vadd.f32 %v643, %v941
        %v945 = vtanh.pop %v943
        %v946 = vtanh.pop %v944
        %v947 = vsub.f32 1.0, %v853
        %v948 = vsub.f32 1.0, %v868
        %v949 = vmul.f32 %v947, %v945
        %v950 = vmul.f32 %v948, %v946
        %v951 = vmul.f32 %v853, %v488
        %v952 = vmul.f32 %v868, %v489
        %v953 = vadd.f32 %v949, %v951
        %v954 = vadd.f32 %v950, %v952
        %955 = vst [vmem:[%s478] sm:$0xff] %v953
        %956 = vst [vmem:[%s478 + $0x8] sm:$0xff] %v954
        %s957 = sand.u32 %s196, 1
        %s958 = scalar_lea.sflag [#allocation4], %s957
        %s959 = sand.u32 %s196, 1
        %s960 = smul.addr %s959, 16
        %s961 = scalar_lea.vmem [#allocation13], %s960
        // Predicated region
        $region69: #{tpu_custom_call.1} parent=43 // pred_check
          %p962 = pneg %p206
        $region70: #{tpu_custom_call.1} parent=43 // pred_check_branch
          %964 = sbr.rel (%p962) target = $region72
        $region71: #{tpu_custom_call.1} parent=43 // pred_region
          %s965 = smul.u32 2, %s32
          %967 = vsyncadd %s958, 0
          %s968 = smul.addr %s965, 8
          %s969 = scalar_lea.hbm %s6, %s968
          %s970 = sshll.u32 %s961, 4
          %s971 = int_to_ptr.vmem [resolvable:$true] %s970
          %s972 = sshll.u32 %s969, 4
          %s973 = int_to_ptr.hbm [resolvable:$true] %s972
          %978 = dma.vmem_to_hbm [thread:$0]  %s971, 256, %s973, %s958, 128, 128, 8
        $region72: #{tpu_custom_call.1} parent=43 // pred_fallthru
          _
      $region44: #{tpu_custom_call.1} parent=5 // pred_fallthru
        _
      %p979 = scmp.le.s32.totalorder 2, %s27
      // Predicated region
      $region73: #{tpu_custom_call.1} parent=5 // pred_check
        %p980 = pneg %p979
      $region74: #{tpu_custom_call.1} parent=5 // pred_check_branch
        %982 = sbr.rel (%p980) target = $region76
      $region75: #{tpu_custom_call.1} parent=5 // pred_region
        %s983 = ssub.s32 %s27, 2
        // Predicated region
        $region77: #{tpu_custom_call.1} parent=75 // pred_check
          %p984 = pneg %p212
        $region78: #{tpu_custom_call.1} parent=75 // pred_check_branch
          %986 = sbr.rel (%p984) target = $region80
        $region79: #{tpu_custom_call.1} parent=75 // pred_region
          %s987 = sand.u32 %s197, 1
          %s988 = scalar_lea.sflag [#allocation4], %s987
          %s989 = sand.u32 %s197, 1
          %s990 = smul.addr %s989, 16
          %s991 = scalar_lea.vmem [#allocation13], %s990
          %993 = dma.done %s988, 256
        $region80: #{tpu_custom_call.1} parent=75 // pred_fallthru
          _
      $region76: #{tpu_custom_call.1} parent=5 // pred_fallthru
        _
    $region6: #{tpu_custom_call.1} parent=1 // loop_footer
      %s31 = sadd.s32 1, %s27
    $region7: #{tpu_custom_call.1} parent=1 // loop_footer_branch
      %26 = sbr.rel target = $region3
    $region8: #{tpu_custom_call.1} parent=1 // loop_exit
      _
    %994 = vsyncpa [#allocation3], 1
    %s995 = scalar_lea.sflag [#allocation3], 1
    %996 = vsyncpa %s995, 1
    %997 = vsyncpa [#allocation6], 1
    %s998 = scalar_lea.sflag [#allocation6], 1
    %999 = vsyncpa %s998, 1
    %1000 = vsyncpa [#allocation9], 1
    %s1001 = scalar_lea.sflag [#allocation9], 1
    %1002 = vsyncpa %s1001, 1
    %1003 = vsyncpa [#allocation12], 1
    %s1004 = scalar_lea.sflag [#allocation12], 1
    %1005 = vsyncpa %s1004, 1
    %1006 = vsyncpa [#allocation4], 1
    %s1007 = scalar_lea.sflag [#allocation4], 1
    %1008 = vsyncpa %s1007, 1

</llo_original>
